<compile_context>
chip_gen: v6e
topology: v6e:2x2x1
jax: 0.10.0
libtpu: 0.0.40
codegen_flags: <defaults>
</compile_context>

<pallas_src>
import functools
import math

import jax
import jax.numpy as jnp
from jax.experimental import pallas as pl
from jax.experimental.pallas import tpu as pltpu

_ROW = 1024               # flattened row = 8 sublanes * 128 lanes (one f32 vreg)
_MAX_ROWS_PER_TILE = 256  # 256 * 1024 f32 = 1 MiB per input per pipeline buffer


def _dice_loss_conf_kernel(x_ref, t_ref, m_ref, dice_ref, acc_i_ref, acc_t_ref,
                           *, smooth):
    ti = pl.program_id(1)

    # Reset the per-sample vector accumulators on the first reduction step.
    @pl.when(ti == 0)
    def _():
        acc_i_ref[...] = jnp.zeros_like(acc_i_ref)
        acc_t_ref[...] = jnp.zeros_like(acc_t_ref)

    m = m_ref[0].astype(jnp.float32)          # (r_tile, 1024)
    x = x_ref[0].astype(jnp.float32) * m      # inputs  * mask
    t = t_ref[0].astype(jnp.float32) * m      # targets * mask

    # Pure VPU elementwise accumulation; no cross-lane work per tile.
    acc_i_ref[...] += x * t
    acc_t_ref[...] += x + t

    # Finalize: one cross-lane reduce + dice per sample, on the last step only.
    @pl.when(ti == pl.num_programs(1) - 1)
    def _():
        inter = jnp.sum(jnp.sum(acc_i_ref[...], axis=1, keepdims=True),
                        axis=0, keepdims=True)                    # (1, 1)
        total = jnp.sum(jnp.sum(acc_t_ref[...], axis=1, keepdims=True),
                        axis=0, keepdims=True)                    # (1, 1)
        dice_ref[0] = (2.0 * inter + smooth) / (total + smooth)   # (1, 1)


def dice_loss_conf(inputs, targets, mask, smooth=1.0):
    """Pallas TPU implementation of DiceLoss_Conf.forward.

    inputs, targets, mask: arrays of shape (B, C, H, W); targets/mask may use
    a narrower dtype (e.g. bf16) - the kernel computes in f32.
    Returns a scalar float32: log(mean_b(dice_b)).
    """
    assert inputs.shape == targets.shape == mask.shape
    B = inputs.shape[0]
    N = math.prod(inputs.shape[1:])

    # Flattened, lane-dense tiling: (B, R_pad, 1024) in tiles of r_tile rows.
    R = -(-N // _ROW)                                   # ceil(N / 1024)
    if R <= _MAX_ROWS_PER_TILE:
        num_tiles = 1
        r_tile = R                                      # block == full dim
    else:
        num_tiles = -(-R // _MAX_ROWS_PER_TILE)
        rows = -(-R // num_tiles)                       # even split: less padding
        r_tile = -(-rows // 8) * 8                      # sublane-aligned
    R_pad = num_tiles * r_tile
    N_pad = R_pad * _ROW

    def _prep(a):
        a = a.reshape(B, N)
        if N_pad != N:
            # Zero padding contributes 0 to both intersection and total.
            a = jnp.pad(a, ((0, 0), (0, N_pad - N)))
        return a.reshape(B, R_pad, _ROW)

    x3, t3, m3 = _prep(inputs), _prep(targets), _prep(mask)

    in_spec = pl.BlockSpec((1, r_tile, _ROW), lambda b, t: (b, t, 0))
    out_spec = pl.BlockSpec((1, 1, 1), lambda b, t: (b, 0, 0))

    kernel = functools.partial(_dice_loss_conf_kernel, smooth=float(smooth))

    dice = pl.pallas_call(
        kernel,
        out_shape=jax.ShapeDtypeStruct((B, 1, 1), jnp.float32),
        grid_spec=pltpu.PrefetchScalarGridSpec(
            num_scalar_prefetch=0,
            grid=(B, num_tiles),
            in_specs=[in_spec, in_spec, in_spec],
            out_specs=out_spec,
            scratch_shapes=[
                pltpu.VMEM((r_tile, _ROW), jnp.float32),   # sum(x*t) partials
                pltpu.VMEM((r_tile, _ROW), jnp.float32),   # sum(x+t) partials
            ],
        ),
        compiler_params=pltpu.CompilerParams(
            # Per-sample outputs, no cross-batch accumulator -> batch axis is
            # parallel (v7x megacore); reduction axis carries the accumulators.
            dimension_semantics=("parallel", "arbitrary"),
            # Headroom for 3 double-buffered 1 MiB inputs + 2 MiB scratch on
            # every generation (safe: well below physical VMEM everywhere).
            vmem_limit_bytes=32 * 1024 * 1024,
        ),
    )(x3, t3, m3)

    # Trivial finalize in XLA keeps the batch axis parallelizable in-kernel.
    return jnp.log(jnp.mean(dice.reshape(B)))


def _reference(inputs, targets, mask, smooth=1.0):
    x = inputs * mask
    t = targets * mask
    intersection = jnp.sum(x * t, axis=(1, 2, 3))
    total = jnp.sum(x + t, axis=(1, 2, 3))
    dice = (2.0 * intersection + smooth) / (total + smooth)
    return jnp.log(jnp.mean(dice))


if __name__ == "__main__":
    key = jax.random.PRNGKey(0)
    k1, k2, k3 = jax.random.split(key, 3)

    B, C, H, W = 2, 4, 16, 16
    inputs = jax.nn.sigmoid(jax.random.normal(k1, (B, C, H, W), dtype=jnp.float32))
    targets_f32 = (jax.random.uniform(k2, (B, C, H, W)) > 0.5).astype(jnp.float32)
    mask_f32 = (jax.random.uniform(k3, (B, C, H, W)) > 0.3).astype(jnp.float32)

    # 0/1-valued targets/mask are exact in bf16; shipping them narrow halves
    # their HBM bytes for this bandwidth-bound kernel (kernel upcasts to f32).
    targets = targets_f32.astype(jnp.bfloat16)
    mask = mask_f32.astype(jnp.bfloat16)

    loss = dice_loss_conf(inputs, targets, mask, smooth=1.0)
    loss = jax.block_until_ready(loss)

    ref = _reference(inputs, targets_f32, mask_f32, smooth=1.0)
    assert jnp.allclose(loss, ref, atol=1e-5, rtol=1e-5), (loss, ref)

    print("KERNEL_OK")
</pallas_src>

<mosaic_0001>
module attributes {stable_mosaic.version = 11 : i64} {
  func.func @_dice_loss_conf_kernel(%arg0: i32, %arg1: i32, %arg2: memref<1x1x1024xf32, #tpu.memory_space<vmem>>, %arg3: memref<1x1x1024xbf16, #tpu.memory_space<vmem>>, %arg4: memref<1x1x1024xbf16, #tpu.memory_space<vmem>>, %arg5: memref<1x1x1xf32, #tpu.memory_space<vmem>>, %arg6: memref<1x1024xf32, #tpu.memory_space<vmem>>, %arg7: memref<1x1024xf32, #tpu.memory_space<vmem>>) attributes {dimension_semantics = [#tpu.dimension_semantics<parallel>, #tpu.dimension_semantics<arbitrary>], iteration_bounds = array<i64: 2, 1>, scalar_prefetch = 0 : i64, scratch_operands = 2 : i64, tpu.core_type = #tpu.core_type<tc>, window_params = [{transform_indices = @transform_0, window_bounds = array<i64: 1, 1, 1024>}, {transform_indices = @transform_1, window_bounds = array<i64: 1, 1, 1024>}, {transform_indices = @transform_2, window_bounds = array<i64: 1, 1, 1024>}, {transform_indices = @transform_3, window_bounds = array<i64: 1, 1, 1>}]} {
    %c0_i32 = arith.constant 0 : i32
    %0 = arith.cmpi eq, %arg1, %c0_i32 : i32
    %1 = arith.extui %0 : i1 to i32
    %c0_i32_0 = arith.constant 0 : i32
    %2 = arith.cmpi ne, %1, %c0_i32_0 : i32
    scf.if %2 {
      %cst = arith.constant 0.000000e+00 : f32
      %24 = vector.broadcast %cst : f32 to vector<1x1024xf32>
      %c0_19 = arith.constant 0 : index
      %c0_20 = arith.constant 0 : index
      %25 = vector.load %arg6[%c0_19, %c0_20] : memref<1x1024xf32, #tpu.memory_space<vmem>>, vector<1x1024xf32>
      tpu.vector_store %arg6[%c0_19, %c0_20], %24 {strides = array<i32>} : memref<1x1024xf32, #tpu.memory_space<vmem>>, vector<1x1024xf32>,
      %cst_21 = arith.constant 0.000000e+00 : f32
      %26 = vector.broadcast %cst_21 : f32 to vector<1x1024xf32>
      %c0_22 = arith.constant 0 : index
      %c0_23 = arith.constant 0 : index
      %27 = vector.load %arg7[%c0_22, %c0_23] : memref<1x1024xf32, #tpu.memory_space<vmem>>, vector<1x1024xf32>
      tpu.vector_store %arg7[%c0_22, %c0_23], %26 {strides = array<i32>} : memref<1x1024xf32, #tpu.memory_space<vmem>>, vector<1x1024xf32>,
    } else {
    }
    %c0 = arith.constant 0 : index
    %c0_1 = arith.constant 0 : index
    %c0_2 = arith.constant 0 : index
    %3 = vector.load %arg4[%c0, %c0_1, %c0_2] : memref<1x1x1024xbf16, #tpu.memory_space<vmem>>, vector<1x1x1024xbf16>
    %4 = vector.shape_cast %3 : vector<1x1x1024xbf16> to vector<1x1024xbf16>
    %5 = arith.extf %4 : vector<1x1024xbf16> to vector<1x1024xf32>
    %c0_3 = arith.constant 0 : index
    %c0_4 = arith.constant 0 : index
    %c0_5 = arith.constant 0 : index
    %6 = vector.load %arg2[%c0_3, %c0_4, %c0_5] : memref<1x1x1024xf32, #tpu.memory_space<vmem>>, vector<1x1x1024xf32>
    %7 = vector.shape_cast %6 : vector<1x1x1024xf32> to vector<1x1024xf32>
    %8 = arith.mulf %7, %5 : vector<1x1024xf32>
    %c0_6 = arith.constant 0 : index
    %c0_7 = arith.constant 0 : index
    %c0_8 = arith.constant 0 : index
    %9 = vector.load %arg3[%c0_6, %c0_7, %c0_8] : memref<1x1x1024xbf16, #tpu.memory_space<vmem>>, vector<1x1x1024xbf16>
    %10 = vector.shape_cast %9 : vector<1x1x1024xbf16> to vector<1x1024xbf16>
    %11 = arith.extf %10 : vector<1x1024xbf16> to vector<1x1024xf32>
    %12 = arith.mulf %11, %5 : vector<1x1024xf32>
    %c0_9 = arith.constant 0 : index
    %c0_10 = arith.constant 0 : index
    %13 = vector.load %arg6[%c0_9, %c0_10] : memref<1x1024xf32, #tpu.memory_space<vmem>>, vector<1x1024xf32>
    %14 = arith.mulf %8, %12 : vector<1x1024xf32>
    %15 = arith.addf %13, %14 : vector<1x1024xf32>
    %c0_11 = arith.constant 0 : index
    %c0_12 = arith.constant 0 : index
    %16 = vector.load %arg6[%c0_11, %c0_12] : memref<1x1024xf32, #tpu.memory_space<vmem>>, vector<1x1024xf32>
    tpu.vector_store %arg6[%c0_11, %c0_12], %15 {strides = array<i32>} : memref<1x1024xf32, #tpu.memory_space<vmem>>, vector<1x1024xf32>,
    %c0_13 = arith.constant 0 : index
    %c0_14 = arith.constant 0 : index
    %17 = vector.load %arg7[%c0_13, %c0_14] : memref<1x1024xf32, #tpu.memory_space<vmem>>, vector<1x1024xf32>
    %18 = arith.addf %8, %12 : vector<1x1024xf32>
    %19 = arith.addf %17, %18 : vector<1x1024xf32>
    %c0_15 = arith.constant 0 : index
    %c0_16 = arith.constant 0 : index
    %20 = vector.load %arg7[%c0_15, %c0_16] : memref<1x1024xf32, #tpu.memory_space<vmem>>, vector<1x1024xf32>
    tpu.vector_store %arg7[%c0_15, %c0_16], %19 {strides = array<i32>} : memref<1x1024xf32, #tpu.memory_space<vmem>>, vector<1x1024xf32>,
    %c0_i32_17 = arith.constant 0 : i32
    %21 = arith.cmpi eq, %arg1, %c0_i32_17 : i32
    %22 = arith.extui %21 : i1 to i32
    %c0_i32_18 = arith.constant 0 : i32
    %23 = arith.cmpi ne, %22, %c0_i32_18 : i32
    scf.if %23 {
      %c0_19 = arith.constant 0 : index
      %c0_20 = arith.constant 0 : index
      %24 = vector.load %arg6[%c0_19, %c0_20] : memref<1x1024xf32, #tpu.memory_space<vmem>>, vector<1x1024xf32>
      %cst = arith.constant dense<0.000000e+00> : vector<1xf32>
      %25 = vector.multi_reduction <add>, %24, %cst [1] : vector<1x1024xf32> to vector<1xf32>
      %26 = vector.shape_cast %25 : vector<1xf32> to vector<1x1xf32>
      %cst_21 = arith.constant dense<0.000000e+00> : vector<1xf32>
      %27 = vector.multi_reduction <add>, %26, %cst_21 [0] : vector<1x1xf32> to vector<1xf32>
      %28 = vector.shape_cast %27 : vector<1xf32> to vector<1x1xf32>
      %c0_22 = arith.constant 0 : index
      %c0_23 = arith.constant 0 : index
      %29 = vector.load %arg7[%c0_22, %c0_23] : memref<1x1024xf32, #tpu.memory_space<vmem>>, vector<1x1024xf32>
      %cst_24 = arith.constant dense<0.000000e+00> : vector<1xf32>
      %30 = vector.multi_reduction <add>, %29, %cst_24 [1] : vector<1x1024xf32> to vector<1xf32>
      %31 = vector.shape_cast %30 : vector<1xf32> to vector<1x1xf32>
      %cst_25 = arith.constant dense<0.000000e+00> : vector<1xf32>
      %32 = vector.multi_reduction <add>, %31, %cst_25 [0] : vector<1x1xf32> to vector<1xf32>
      %33 = vector.shape_cast %32 : vector<1xf32> to vector<1x1xf32>
      %cst_26 = arith.constant 2.000000e+00 : f32
      %34 = vector.broadcast %cst_26 : f32 to vector<1x1xf32>
      %35 = arith.mulf %34, %28 : vector<1x1xf32>
      %cst_27 = arith.constant 1.000000e+00 : f32
      %36 = vector.broadcast %cst_27 : f32 to vector<1x1xf32>
      %37 = arith.addf %35, %36 : vector<1x1xf32>
      %cst_28 = arith.constant 1.000000e+00 : f32
      %38 = vector.broadcast %cst_28 : f32 to vector<1x1xf32>
      %39 = arith.addf %33, %38 : vector<1x1xf32>
      %40 = arith.divf %37, %39 : vector<1x1xf32>
      %c0_29 = arith.constant 0 : index
      %c0_30 = arith.constant 0 : index
      %c0_31 = arith.constant 0 : index
      %41 = vector.load %arg5[%c0_29, %c0_30, %c0_31] : memref<1x1x1xf32, #tpu.memory_space<vmem>>, vector<1x1x1xf32>
      %42 = vector.shape_cast %41 : vector<1x1x1xf32> to vector<1x1xf32>
      %43 = vector.shape_cast %40 : vector<1x1xf32> to vector<1x1x1xf32>
      tpu.vector_store %arg5[%c0_29, %c0_30, %c0_31], %43 {strides = array<i32>} : memref<1x1x1xf32, #tpu.memory_space<vmem>>, vector<1x1x1xf32>,
    } else {
    }
    return
  }
  func.func @transform_0(%arg0: i32, %arg1: i32) -> (i32, i32, i32) {
    %c0_i32 = arith.constant 0 : i32
    %c0_i32_0 = arith.constant 0 : i32
    return %arg0, %arg1, %c0_i32 : i32, i32, i32
  }
  func.func @transform_1(%arg0: i32, %arg1: i32) -> (i32, i32, i32) {
    %c0_i32 = arith.constant 0 : i32
    %c0_i32_0 = arith.constant 0 : i32
    return %arg0, %arg1, %c0_i32 : i32, i32, i32
  }
  func.func @transform_2(%arg0: i32, %arg1: i32) -> (i32, i32, i32) {
    %c0_i32 = arith.constant 0 : i32
    %c0_i32_0 = arith.constant 0 : i32
    return %arg0, %arg1, %c0_i32 : i32, i32, i32
  }
  func.func @transform_3(%arg0: i32, %arg1: i32) -> (i32, i32, i32) {
    %c0_i32 = arith.constant 0 : i32
    %c0_i32_0 = arith.constant 0 : i32
    %c0_i32_1 = arith.constant 0 : i32
    return %arg0, %c0_i32, %c0_i32_0 : i32, i32, i32
  }
}

</mosaic_0001>

<llo_original>
// kernel: tpu_custom_call.1
$region0: #{tpu_custom_call.1}
  #allocation0 [shape = 'u32[]', space=smem, size = 0x4, offset = 0x4, fixed_abs, tag = 'smem constant byte address 0x4 - core index']
  #allocation1 [shape = 'u32[144,128]{1,0:T(1,128)}', space=vmem, size = 0x12000, scoped, tag = 'internal scratch']
  #allocation2 [shape = 'f32[1,1024]{1,0:T(1,128)}', space=vmem, size = 0x1000, scoped, tag = 'scratch operand']
  #allocation3 [shape = 'f32[1,1024]{1,0:T(1,128)}', space=vmem, size = 0x1000, scoped, tag = 'scratch operand']
  %s0 = inlined_call_operand.vmem [shape: f32[2,1,1024], index: 0, kind: input, shape index: {}]
  %s1 = inlined_call_operand.vmem [shape: bf16[2,1,1024], index: 1, kind: input, shape index: {}]
  %s2 = inlined_call_operand.vmem [shape: bf16[2,1,1024], index: 2, kind: input, shape index: {}]
  %s3 = inlined_call_operand.vmem [shape: f32[2,1,1], index: 3, kind: output, shape index: {}]
  %s4 = sld [smem:[#allocation0]]
  $region53: #{tpu_custom_call.1} parent=0
    _
  %s6 = ssub.s32 1, %s4
  %s7 = scalar_select 0, %s6, %s4
  loop: start=0, step=1, limit=4
  $region2: #{tpu_custom_call.1} parent=0 // loop_pre_header
    _
  $region3: #{tpu_custom_call.1} parent=0 // loop_header
    %s9 = sphi 0, %s13
    %p10 = scmp.ge.s32.totalorder %s9, 4
    %s16 = sphi 0, %s28
    %s17 = sphi 0, %s24
    %s18 = sphi 0, %s16
    %s19 = sphi 0, %s17
    %s20 = sphi 0, %s18
    %s21 = sphi 0, %s19
    %s33 = sphi 0, %s35
    %s36 = sphi 0, %s33
    %s37 = sphi 0, %s36
    %s53 = sphi 0, %s37
    %s61 = sphi 0, %s63
    %s64 = sphi 0, %s61
    %s65 = sphi 0, %s64
    %s81 = sphi 0, %s65
    %s89 = sphi 0, %s91
    %s92 = sphi 0, %s89
    %s93 = sphi 0, %s92
    %s109 = sphi 0, %s93
    %s115 = sphi 0, %s117
    %s118 = sphi 0, %s115
    %s119 = sphi 0, %s118
    %s135 = sphi 0, %s119
  $region4: #{tpu_custom_call.1} parent=0 // loop_header_branch
    %12 = sbr.rel (%p10) target = $region8
  $region5: #{tpu_custom_call.1} parent=0 // loop_body
    %s14 = ssub.s32 %s9, 1
    %s15 = ssub.s32 %s9, 2
    %s22 = sadd.s32 1, %s17
    %p23 = scmp.ge.s32.totalorder %s22, 1
    %s24 = scalar_select %p23, 0, %s22
    %s25 = sadd.s32 1, %s16
    %s26 = scalar_select %p23, %s25, %s16
    %p27 = scmp.ge.s32.totalorder %s26, 2
    %s28 = scalar_select %p27, 0, %s26
    %s29 = ssub.s32 %s16, %s28
    %s30 = ssub.s32 %s17, %s24
    %s31 = sor.u32 %s29, %s30
    %p32 = scmp.eq.s32.totalorder %s31, 0
    %s34 = sadd.s32 %s33, 1
    %s35 = scalar_select %p32, %s33, %s34
    %p38 = pneg %p32
    %p39 = scmp.eq.s32.totalorder %s9, 1
    %p40 = por %p38, %p39
    %p41 = scmp.ne.s32.totalorder %s33, %s36
    %p42 = scmp.eq.s32.totalorder %s9, 0
    %p43 = por %p41, %p42
    %p44 = scmp.ne.s32.totalorder %s33, %s36
    %p45 = scmp.eq.s32.totalorder %s14, 1
    %p46 = por %p44, %p45
    %p47 = scmp.ne.s32.totalorder %s36, %s37
    %p48 = scmp.eq.s32.totalorder %s14, 0
    %p49 = por %p47, %p48
    %p50 = scmp.ne.s32.totalorder %s36, %s37
    %p51 = scmp.eq.s32.totalorder %s15, 1
    %p52 = por %p50, %p51
    %p54 = scmp.ne.s32.totalorder %s37, %s53
    %p55 = scmp.eq.s32.totalorder %s15, 0
    %p56 = por %p54, %p55
    %s57 = ssub.s32 %s16, %s28
    %s58 = ssub.s32 %s17, %s24
    %s59 = sor.u32 %s57, %s58
    %p60 = scmp.eq.s32.totalorder %s59, 0
    %s62 = sadd.s32 %s61, 1
    %s63 = scalar_select %p60, %s61, %s62
    %p66 = pneg %p60
    %p67 = scmp.eq.s32.totalorder %s9, 1
    %p68 = por %p66, %p67
    %p69 = scmp.ne.s32.totalorder %s61, %s64
    %p70 = scmp.eq.s32.totalorder %s9, 0
    %p71 = por %p69, %p70
    %p72 = scmp.ne.s32.totalorder %s61, %s64
    %p73 = scmp.eq.s32.totalorder %s14, 1
    %p74 = por %p72, %p73
    %p75 = scmp.ne.s32.totalorder %s64, %s65
    %p76 = scmp.eq.s32.totalorder %s14, 0
    %p77 = por %p75, %p76
    %p78 = scmp.ne.s32.totalorder %s64, %s65
    %p79 = scmp.eq.s32.totalorder %s15, 1
    %p80 = por %p78, %p79
    %p82 = scmp.ne.s32.totalorder %s65, %s81
    %p83 = scmp.eq.s32.totalorder %s15, 0
    %p84 = por %p82, %p83
    %s85 = ssub.s32 %s16, %s28
    %s86 = ssub.s32 %s17, %s24
    %s87 = sor.u32 %s85, %s86
    %p88 = scmp.eq.s32.totalorder %s87, 0
    %s90 = sadd.s32 %s89, 1
    %s91 = scalar_select %p88, %s89, %s90
    %p94 = pneg %p88
    %p95 = scmp.eq.s32.totalorder %s9, 1
    %p96 = por %p94, %p95
    %p97 = scmp.ne.s32.totalorder %s89, %s92
    %p98 = scmp.eq.s32.totalorder %s9, 0
    %p99 = por %p97, %p98
    %p100 = scmp.ne.s32.totalorder %s89, %s92
    %p101 = scmp.eq.s32.totalorder %s14, 1
    %p102 = por %p100, %p101
    %p103 = scmp.ne.s32.totalorder %s92, %s93
    %p104 = scmp.eq.s32.totalorder %s14, 0
    %p105 = por %p103, %p104
    %p106 = scmp.ne.s32.totalorder %s92, %s93
    %p107 = scmp.eq.s32.totalorder %s15, 1
    %p108 = por %p106, %p107
    %p110 = scmp.ne.s32.totalorder %s93, %s109
    %p111 = scmp.eq.s32.totalorder %s15, 0
    %p112 = por %p110, %p111
    %s113 = ssub.s32 %s16, %s28
    %p114 = scmp.eq.s32.totalorder %s113, 0
    %s116 = sadd.s32 %s115, 1
    %s117 = scalar_select %p114, %s115, %s116
    %p120 = pneg %p114
    %p121 = scmp.eq.s32.totalorder %s9, 1
    %p122 = por %p120, %p121
    %p123 = scmp.ne.s32.totalorder %s115, %s118
    %p124 = scmp.eq.s32.totalorder %s9, 0
    %p125 = por %p123, %p124
    %p126 = scmp.ne.s32.totalorder %s115, %s118
    %p127 = scmp.eq.s32.totalorder %s14, 1
    %p128 = por %p126, %p127
    %p129 = scmp.ne.s32.totalorder %s118, %s119
    %p130 = scmp.eq.s32.totalorder %s14, 0
    %p131 = por %p129, %p130
    %p132 = scmp.ne.s32.totalorder %s118, %s119
    %p133 = scmp.eq.s32.totalorder %s15, 1
    %p134 = por %p132, %p133
    %p136 = scmp.ne.s32.totalorder %s119, %s135
    %p137 = scmp.eq.s32.totalorder %s15, 0
    %p138 = por %p136, %p137
    %p139 = scmp.le.s32.totalorder 1, %s9
    %p140 = scmp.lt.s32.totalorder %s9, 3
    %p141 = pnand %p139, %p140
    %p142 = pneg %p141
    // Predicated region
    $region9: #{tpu_custom_call.1} parent=5 // pred_check
      _
    $region10: #{tpu_custom_call.1} parent=5 // pred_check_branch
      %144 = sbr.rel (%p141) target = $region12
    $region11: #{tpu_custom_call.1} parent=5 // pred_region
      %s145 = ssub.s32 %s9, 1
    $region12: #{tpu_custom_call.1} parent=5 // pred_fallthru
      _
    %p146 = scmp.lt.s32.totalorder %s9, 2
    // Predicated region
    $region13: #{tpu_custom_call.1} parent=5 // pred_check
      %p147 = pneg %p146
    $region14: #{tpu_custom_call.1} parent=5 // pred_check_branch
      %149 = sbr.rel (%p147) target = $region16
    $region15: #{tpu_custom_call.1} parent=5 // pred_region
      // Predicated region
      $region17: #{tpu_custom_call.1} parent=15 // pred_check
        %p150 = pneg %p43
      $region18: #{tpu_custom_call.1} parent=15 // pred_check_branch
        %152 = sbr.rel (%p150) target = $region20
      $region19: #{tpu_custom_call.1} parent=15 // pred_region
        %p153 = scmp.lt.s32.totalorder %s16, 1
        %s154 = scalar_select %p153, %s16, 1
        %p155 = scmp.lt.s32.totalorder %s17, 0
        %s156 = scalar_select %p155, %s17, 0
        %s157 = smul.addr %s156, 8
        %s158 = smul.addr %s154, 8
        %s159 = sadd.s32 %s157, %s158
        %s160 = scalar_lea.vmem %s0, %s159
      $region20: #{tpu_custom_call.1} parent=15 // pred_fallthru
        _
      // Predicated region
      $region21: #{tpu_custom_call.1} parent=15 // pred_check
        %p161 = pneg %p71
      $region22: #{tpu_custom_call.1} parent=15 // pred_check_branch
        %163 = sbr.rel (%p161) target = $region24
      $region23: #{tpu_custom_call.1} parent=15 // pred_region
        %p164 = scmp.lt.s32.totalorder %s16, 1
        %s165 = scalar_select %p164, %s16, 1
        %p166 = scmp.lt.s32.totalorder %s17, 0
        %s167 = scalar_select %p166, %s17, 0
        %s168 = smul.addr %s167, 8
        %s169 = smul.addr %s165, 8
        %s170 = sadd.s32 %s168, %s169
        %s171 = scalar_lea.vmem %s1, %s170
      $region24: #{tpu_custom_call.1} parent=15 // pred_fallthru
        _
      // Predicated region
      $region25: #{tpu_custom_call.1} parent=15 // pred_check
        %p172 = pneg %p99
      $region26: #{tpu_custom_call.1} parent=15 // pred_check_branch
        %174 = sbr.rel (%p172) target = $region28
      $region27: #{tpu_custom_call.1} parent=15 // pred_region
        %p175 = scmp.lt.s32.totalorder %s16, 1
        %s176 = scalar_select %p175, %s16, 1
        %p177 = scmp.lt.s32.totalorder %s17, 0
        %s178 = scalar_select %p177, %s17, 0
        %s179 = smul.addr %s178, 8
        %s180 = smul.addr %s176, 8
        %s181 = sadd.s32 %s179, %s180
        %s182 = scalar_lea.vmem %s2, %s181
      $region28: #{tpu_custom_call.1} parent=15 // pred_fallthru
        _
    $region16: #{tpu_custom_call.1} parent=5 // pred_fallthru
      _
    %p183 = scmp.le.s32.totalorder 1, %s9
    %p184 = scmp.lt.s32.totalorder %s9, 3
    %p185 = pnand %p183, %p184
    %p186 = pneg %p185
    // Predicated region
    $region29: #{tpu_custom_call.1} parent=5 // pred_check
      _
    $region30: #{tpu_custom_call.1} parent=5 // pred_check_branch
      %188 = sbr.rel (%p185) target = $region32
    $region31: #{tpu_custom_call.1} parent=5 // pred_region
      %s189 = ssub.s32 %s9, 1
      %p190 = scmp.lt.s32.totalorder %s18, 1
      %s191 = scalar_select %p190, %s18, 1
      %p192 = scmp.lt.s32.totalorder %s19, 0
      %s193 = scalar_select %p192, %s19, 0
      %s194 = smul.addr %s193, 8
      %s195 = smul.addr %s191, 8
      %s196 = sadd.s32 %s194, %s195
      %s197 = scalar_lea.vmem %s0, %s196
      %p198 = pneg %p49
      %p199 = pneg %p46
      %p200 = scmp.lt.s32.totalorder %s18, 1
      %s201 = scalar_select %p200, %s18, 1
      %p202 = scmp.lt.s32.totalorder %s19, 0
      %s203 = scalar_select %p202, %s19, 0
      %s204 = smul.addr %s203, 8
      %s205 = smul.addr %s201, 8
      %s206 = sadd.s32 %s204, %s205
      %s207 = scalar_lea.vmem %s1, %s206
      %p208 = pneg %p77
      %p209 = pneg %p74
      %p210 = scmp.lt.s32.totalorder %s18, 1
      %s211 = scalar_select %p210, %s18, 1
      %p212 = scmp.lt.s32.totalorder %s19, 0
      %s213 = scalar_select %p212, %s19, 0
      %s214 = smul.addr %s213, 8
      %s215 = smul.addr %s211, 8
      %s216 = sadd.s32 %s214, %s215
      %s217 = scalar_lea.vmem %s2, %s216
      %p218 = pneg %p105
      %p219 = pneg %p102
      %p220 = pneg %p131
      %p221 = pneg %p128
      %p222 = scmp.lt.s32.totalorder %s18, 1
      %s223 = scalar_select %p222, %s18, 1
      %s224 = scalar_lea.vmem %s3, %s223
      %p225 = scmp.lt.s32.totalorder %s18, 1
      %s226 = scalar_select %p225, %s18, 1
      %p227 = scmp.lt.s32.totalorder %s19, 0
      %s228 = scalar_select %p227, %s19, 0
      %s229 = smul.addr %s228, 8
      %s230 = smul.addr %s226, 8
      %s231 = sadd.s32 %s229, %s230
      %s232 = scalar_lea.vmem %s0, %s231
      %p233 = scmp.lt.s32.totalorder %s18, 1
      %s234 = scalar_select %p233, %s18, 1
      %p235 = scmp.lt.s32.totalorder %s19, 0
      %s236 = scalar_select %p235, %s19, 0
      %s237 = smul.addr %s236, 8
      %s238 = smul.addr %s234, 8
      %s239 = sadd.s32 %s237, %s238
      %s240 = scalar_lea.vmem %s1, %s239
      %p241 = scmp.lt.s32.totalorder %s18, 1
      %s242 = scalar_select %p241, %s18, 1
      %p243 = scmp.lt.s32.totalorder %s19, 0
      %s244 = scalar_select %p243, %s19, 0
      %s245 = smul.addr %s244, 8
      %s246 = smul.addr %s242, 8
      %s247 = sadd.s32 %s245, %s246
      %s248 = scalar_lea.vmem %s2, %s247
      %p249 = scmp.lt.s32.totalorder %s18, 1
      %s250 = scalar_select %p249, %s18, 1
      %s251 = scalar_lea.vmem %s3, %s250
      %p252 = scmp.eq.s32.totalorder %s19, 0
      // Predicated region
      $region33: #{tpu_custom_call.1} parent=31 // pred_check
        %p253 = pneg %p252
      $region34: #{tpu_custom_call.1} parent=31 // pred_check_branch
        %255 = sbr.rel (%p253) target = $region36
      $region35: #{tpu_custom_call.1} parent=31 // pred_region
        %256 = vst [vmem:[#allocation2] sm:$0xff] 0.0
        %257 = vst [vmem:[#allocation3] sm:$0xff] 0.0
      $region36: #{tpu_custom_call.1} parent=31 // pred_fallthru
        _
      %v258 = vld [vmem:[%s248] sm:$0xff]
      %v259 = vunpack.c.l.bf16 %v258
      %v260 = vunpack.c.h.bf16 %v258
      %v261 = vld [vmem:[%s232] sm:$0xff]
      %v265 = vunpack.c.l.s4 1966171168
      %v266 = vunpack.c.0.s8 %v265
      %v267 = vlaneseq
      %v268 = vshrl.u32 %v267, 7
      %v269 = vsub.s32 %v266, %v268
      %v270 = vrot.slane %v259, %v269
      %v272 = vunpack.c.l.s4 1966171168
      %v273 = vunpack.c.0.s8 %v272
      %v274 = vlaneseq
      %v275 = vshrl.u32 %v274, 7
      %v276 = vsub.s32 %v273, %v275
      %v277 = vrot.slane %v260, %v276
      %v278 = vcombine.low %v270, %v277
      %v280 = vmul.f32 %v261, %v278
      %v281 = vld [vmem:[%s240] sm:$0xff]
      %v282 = vunpack.c.l.bf16 %v281
      %v283 = vunpack.c.h.bf16 %v281
      %v284 = vmul.f32 %v282, %v259
      %v285 = vmul.f32 %v283, %v260
      %v286 = vld [vmem:[#allocation2] sm:$0xff]
      %v290 = vunpack.c.l.s4 1966171168
      %v291 = vunpack.c.0.s8 %v290
      %v292 = vlaneseq
      %v293 = vshrl.u32 %v292, 7
      %v294 = vsub.s32 %v291, %v293
      %v295 = vrot.slane %v284, %v294
      %v297 = vunpack.c.l.s4 1966171168
      %v298 = vunpack.c.0.s8 %v297
      %v299 = vlaneseq
      %v300 = vshrl.u32 %v299, 7
      %v301 = vsub.s32 %v298, %v300
      %v302 = vrot.slane %v285, %v301
      %v303 = vcombine.low %v295, %v302
      %v305 = vmul.f32 %v280, %v303
      %v306 = vadd.f32 %v286, %v305
      %307 = vst [vmem:[#allocation2] sm:$0xff] %v306
      %v308 = vld [vmem:[#allocation3] sm:$0xff]
      %v309 = vadd.f32 %v280, %v303
      %v310 = vadd.f32 %v308, %v309
      %311 = vst [vmem:[#allocation3] sm:$0xff] %v310
      // Predicated region
      $region37: #{tpu_custom_call.1} parent=31 // pred_check
        %p312 = pneg %p252
      $region38: #{tpu_custom_call.1} parent=31 // pred_check_branch
        %314 = sbr.rel (%p312) target = $region40
      $region39: #{tpu_custom_call.1} parent=31 // pred_region
        %v315 = vld [vmem:[#allocation2] sm:$0xff]
        %v317 = vlaneseq
        %v318 = vshrl.u32 %v317, 7
        %v319 = vsub.s32 0, %v318
        %v320 = vrot.slane %v315, %v319
        %v321 = vlaneseq
        %v322 = vshrl.u32 %v321, 7
        %v323 = vsub.s32 1, %v322
        %v324 = vrot.slane %v315, %v323
        %v325 = vlaneseq
        %v326 = vshrl.u32 %v325, 7
        %v327 = vsub.s32 2, %v326
        %v328 = vrot.slane %v315, %v327
        %v329 = vlaneseq
        %v330 = vshrl.u32 %v329, 7
        %v331 = vsub.s32 3, %v330
        %v332 = vrot.slane %v315, %v331
        %v333 = vlaneseq
        %v334 = vshrl.u32 %v333, 7
        %v335 = vsub.s32 4, %v334
        %v336 = vrot.slane %v315, %v335
        %v337 = vlaneseq
        %v338 = vshrl.u32 %v337, 7
        %v339 = vsub.s32 5, %v338
        %v340 = vrot.slane %v315, %v339
        %v341 = vlaneseq
        %v342 = vshrl.u32 %v341, 7
        %v343 = vsub.s32 6, %v342
        %v344 = vrot.slane %v315, %v343
        %v345 = vlaneseq
        %v346 = vshrl.u32 %v345, 7
        %v347 = vsub.s32 7, %v346
        %v348 = vrot.slane %v315, %v347
        %vm357 = vcmask 1040384
        %v358 = vsel %vm357, %v320, 0.0
        %v359 = vsel %vm357, %v324, 0.0
        %v360 = vadd.f32 %v358, %v359
        %v361 = vsel %vm357, %v328, 0.0
        %v362 = vadd.f32 %v360, %v361
        %v363 = vsel %vm357, %v332, 0.0
        %v364 = vadd.f32 %v362, %v363
        %v365 = vsel %vm357, %v336, 0.0
        %v366 = vadd.f32 %v364, %v365
        %v367 = vsel %vm357, %v340, 0.0
        %v368 = vadd.f32 %v366, %v367
        %v369 = vsel %vm357, %v344, 0.0
        %v370 = vadd.f32 %v368, %v369
        %v371 = vsel %vm357, %v348, 0.0
        %v372 = vadd.f32 %v370, %v371
        %373 = vadd.xlane.f32.xlu0 %v372
        %v374 = vpop.xlane.xlu0 %373
        %v375 = vadd.f32 %v374, 0.0
        %v376 = vld [vmem:[#allocation3] sm:$0xff]
        %v378 = vlaneseq
        %v379 = vshrl.u32 %v378, 7
        %v380 = vsub.s32 0, %v379
        %v381 = vrot.slane %v376, %v380
        %v382 = vlaneseq
        %v383 = vshrl.u32 %v382, 7
        %v384 = vsub.s32 1, %v383
        %v385 = vrot.slane %v376, %v384
        %v386 = vlaneseq
        %v387 = vshrl.u32 %v386, 7
        %v388 = vsub.s32 2, %v387
        %v389 = vrot.slane %v376, %v388
        %v390 = vlaneseq
        %v391 = vshrl.u32 %v390, 7
        %v392 = vsub.s32 3, %v391
        %v393 = vrot.slane %v376, %v392
        %v394 = vlaneseq
        %v395 = vshrl.u32 %v394, 7
        %v396 = vsub.s32 4, %v395
        %v397 = vrot.slane %v376, %v396
        %v398 = vlaneseq
        %v399 = vshrl.u32 %v398, 7
        %v400 = vsub.s32 5, %v399
        %v401 = vrot.slane %v376, %v400
        %v402 = vlaneseq
        %v403 = vshrl.u32 %v402, 7
        %v404 = vsub.s32 6, %v403
        %v405 = vrot.slane %v376, %v404
        %v406 = vlaneseq
        %v407 = vshrl.u32 %v406, 7
        %v408 = vsub.s32 7, %v407
        %v409 = vrot.slane %v376, %v408
        %v418 = vsel %vm357, %v381, 0.0
        %v419 = vsel %vm357, %v385, 0.0
        %v420 = vadd.f32 %v418, %v419
        %v421 = vsel %vm357, %v389, 0.0
        %v422 = vadd.f32 %v420, %v421
        %v423 = vsel %vm357, %v393, 0.0
        %v424 = vadd.f32 %v422, %v423
        %v425 = vsel %vm357, %v397, 0.0
        %v426 = vadd.f32 %v424, %v425
        %v427 = vsel %vm357, %v401, 0.0
        %v428 = vadd.f32 %v426, %v427
        %v429 = vsel %vm357, %v405, 0.0
        %v430 = vadd.f32 %v428, %v429
        %v431 = vsel %vm357, %v409, 0.0
        %v432 = vadd.f32 %v430, %v431
        %433 = vadd.xlane.f32.xlu0 %v432
        %v434 = vpop.xlane.xlu0 %433
        %v435 = vadd.f32 %v434, 0.0
        %v436 = vmul.f32 %v375, 2.0
        %v437 = vadd.f32 %v436, 1.0
        %v438 = vadd.f32 %v435, 1.0
        %v439 = vrcp.pop %v438
        %v440 = vmul.f32 %v437, %v439
        %vm441 = vcmask 0
        %442 = vst.msk [vmem:[%s251] sm:$0x1] %vm441, %v440
      $region40: #{tpu_custom_call.1} parent=31 // pred_fallthru
        _
      %p443 = scmp.lt.s32.totalorder %s18, 1
      %s444 = scalar_select %p443, %s18, 1
      %s445 = scalar_lea.vmem %s3, %s444
      // Predicated region
      $region41: #{tpu_custom_call.1} parent=31 // pred_check
        %p446 = pneg %p128
      $region42: #{tpu_custom_call.1} parent=31 // pred_check_branch
        %448 = sbr.rel (%p446) target = $region44
      $region43: #{tpu_custom_call.1} parent=31 // pred_region
        _
      $region44: #{tpu_custom_call.1} parent=31 // pred_fallthru
        _
    $region32: #{tpu_custom_call.1} parent=5 // pred_fallthru
      _
    %p449 = scmp.le.s32.totalorder 2, %s9
    // Predicated region
    $region45: #{tpu_custom_call.1} parent=5 // pred_check
      %p450 = pneg %p449
    $region46: #{tpu_custom_call.1} parent=5 // pred_check_branch
      %452 = sbr.rel (%p450) target = $region48
    $region47: #{tpu_custom_call.1} parent=5 // pred_region
      %s453 = ssub.s32 %s9, 2
      // Predicated region
      $region49: #{tpu_custom_call.1} parent=47 // pred_check
        %p454 = pneg %p134
      $region50: #{tpu_custom_call.1} parent=47 // pred_check_branch
        %456 = sbr.rel (%p454) target = $region52
      $region51: #{tpu_custom_call.1} parent=47 // pred_region
        %p457 = scmp.lt.s32.totalorder %s20, 1
        %s458 = scalar_select %p457, %s20, 1
        %s459 = scalar_lea.vmem %s3, %s458
      $region52: #{tpu_custom_call.1} parent=47 // pred_fallthru
        _
    $region48: #{tpu_custom_call.1} parent=5 // pred_fallthru
      _
  $region6: #{tpu_custom_call.1} parent=0 // loop_footer
    %s13 = sadd.s32 1, %s9
  $region7: #{tpu_custom_call.1} parent=0 // loop_footer_branch
    %8 = sbr.rel target = $region3
  $region8: #{tpu_custom_call.1} parent=0 // loop_exit
    _

</llo_original>
